<compile_context>
chip_gen: v7x
topology: tpu7x:2x2x1
jax: 0.10.0
libtpu: 0.0.40
codegen_flags: <defaults>
</compile_context>

<pallas_src>
import jax
import jax.numpy as jnp
from jax import lax
from jax.experimental import pallas as pl
from jax.experimental.pallas import tpu as pltpu


# ----------------------------------------------------------------------------
# Fused wavefront kernel: all LSTM layers + final Linear, single invocation.
#   refs: x (T,B,I), w_ihx (I,4LH), b_full (1,4LH), w_pack (LH,4LH),
#         w_fc (H,1), b_fc (1,1)  ->  out (B,1)
# Packed gate-column layout (width 4*L*H):
#   [ i_1..i_L | f_1..f_L | g_1..g_L | o_1..o_L ],  each sub-block H lanes.
# NOTE: for H=32, L=2 the gates tile is (8,256) = exactly two (8,128) vregs
# and the recurrent RHS is 256 lanes wide (full v6e/v7x MXU width).  Other
# H/L remain correct but degrade to less lane-dense layouts.
# ----------------------------------------------------------------------------
def make_fused_wavefront_lstm_fc_kernel(num_layers, seq_len, batch, hidden):
    L, T, B, H = num_layers, seq_len, batch, hidden
    LH = L * H
    G = 4 * LH

    def kernel(x_ref, wihx_ref, bfull_ref, wpack_ref, wfc_ref, bfc_ref, out_ref):
        # --- gate nonlinearity constants (hoisted out of every loop) --------
        #   sigmoid(x) = 0.5 * tanh(0.5 * x) + 0.5   (i, f, o gates)
        #   tanh(x)    = 1.0 * tanh(1.0 * x) + 0.0   (g gates, lanes [2LH,3LH))
        lane = lax.broadcasted_iota(jnp.int32, (B, G), 1)
        is_g = jnp.logical_and(lane >= 2 * LH, lane < 3 * LH)
        gate_mul = jnp.where(is_g, 1.0, 0.5).astype(jnp.float32)
        gate_add = jnp.where(is_g, 0.0, 0.5).astype(jnp.float32)

        # --- hoisted input projection (off the recurrent chain) -------------
        # One batched matmul for all T steps.  Columns of layers >= 2 are zero
        # in w_ihx, so those lanes carry only their (row-constant) biases.
        x2d = x_ref[...].reshape(T * B, x_ref.shape[-1])
        xp = jnp.dot(x2d, wihx_ref[...],
                     preferred_element_type=jnp.float32) + bfull_ref[...]   # (T*B, G)

        wpack = wpack_ref[...]                                              # (LH, G)

        # Wavefront carry: [h_1 | ... | h_L], [c_1 | ... | c_L]
        h_all = jnp.zeros((B, LH), jnp.float32)
        c_all = jnp.zeros((B, LH), jnp.float32)

        # --- wavefront over diagonals (fully unrolled; T, L static) ---------
        # Layer l computes time t = d - (l-1).  One packed matmul per diagonal
        # drives every layer's recurrent path AND layer>=2 input projections.
        for d in range(T + L - 1):
            xp_row = min(d, T - 1)          # clamp: layer-1 lanes unused d>=T
            gates = xp[xp_row * B:(xp_row + 1) * B, :]
            if d > 0:                       # d == 0: h_all == 0 -> skip matmul
                gates = gates + jnp.dot(h_all, wpack,
                                        preferred_element_type=jnp.float32)
            acts = jnp.tanh(gates * gate_mul) * gate_mul + gate_add
            i_a = acts[:, 0 * LH:1 * LH]
            f_a = acts[:, 1 * LH:2 * LH]
            g_a = acts[:, 2 * LH:3 * LH]
            o_a = acts[:, 3 * LH:4 * LH]
            c_all = f_a * c_all + i_a * g_a
            h_all = o_a * jnp.tanh(c_all)
            if d < L - 1:
                # Layers that have not started yet (l-1 > d) must keep h=c=0.
                start_mask = (lane[:, :LH] < (d + 1) * H).astype(jnp.float32)
                h_all = h_all * start_mask
                c_all = c_all * start_mask

        # --- fused final Linear on the top layer's last hidden state --------
        h_last = h_all[:, (L - 1) * H:L * H]                         # (B, H)
        out_ref[...] = (
            jnp.dot(h_last, wfc_ref[...], preferred_element_type=jnp.float32)
            + bfc_ref[...]
        ).astype(out_ref.dtype)

    return kernel


# ----------------------------------------------------------------------------
# Model forward: pack weights into the wavefront layout (plain JAX, tiny),
# then a single fused pallas_call.
#   layer_params: tuple of (w_ih_t (in,4H), w_hh_t (H,4H), b (1,4H)) in
#   PyTorch gate order [i|f|g|o], biases already summed (b_ih + b_hh).
# ----------------------------------------------------------------------------
@jax.jit
def lstm_model_forward(x_bti, layer_params, w_fc, b_fc):
    B, T, I = x_bti.shape
    H = layer_params[0][1].shape[0]
    L = len(layer_params)
    LH = L * H

    x_tbi = jnp.swapaxes(x_bti, 0, 1)                                # (T, B, I)

    wih_t = [p[0] for p in layer_params]
    whh_t = [p[1] for p in layer_params]
    bias = [p[2] for p in layer_params]

    def gate_col(w, g):        # gate g's H columns (PyTorch order i, f, g, o)
        return w[:, g * H:(g + 1) * H]

    # Layer-1 input projection weights, scattered into the packed gate layout.
    wihx_cols = []
    for g in range(4):
        blk = jnp.zeros((I, LH), jnp.float32)
        blk = blk.at[:, 0:H].set(gate_col(wih_t[0], g))
        wihx_cols.append(blk)
    w_ihx = jnp.concatenate(wihx_cols, axis=1)                       # (I, 4LH)

    # All layers' (pre-summed) biases in the packed layout.
    b_full = jnp.concatenate(
        [gate_col(bias[l], g) for g in range(4) for l in range(L)],
        axis=1)                                                      # (1, 4LH)

    # Packed recurrent RHS: block-structured (LH, 4LH).
    #   rows (l)*H:(l+1)*H of layer-l's gate columns   -> W_hh_l  (recurrent)
    #   rows (l-1)*H:l*H   of layer-l's gate columns   -> W_ih_l  (input from
    #                                                     layer l-1), l >= 2
    wpack_cols = []
    for g in range(4):
        for l in range(L):
            col = jnp.zeros((LH, H), jnp.float32)
            col = col.at[l * H:(l + 1) * H, :].set(gate_col(whh_t[l], g))
            if l >= 1:
                col = col.at[(l - 1) * H:l * H, :].set(gate_col(wih_t[l], g))
            wpack_cols.append(col)
    w_pack = jnp.concatenate(wpack_cols, axis=1)                     # (LH, 4LH)

    kernel = make_fused_wavefront_lstm_fc_kernel(L, T, B, H)
    vmem_spec = pl.BlockSpec(memory_space=pltpu.MemorySpace.VMEM)
    return pl.pallas_call(
        kernel,
        out_shape=jax.ShapeDtypeStruct((B, 1), jnp.float32),
        in_specs=[vmem_spec] * 6,
        out_specs=vmem_spec,
    )(x_tbi, w_ihx, b_full, w_pack, w_fc, b_fc)


# ----------------------------------------------------------------------------
# Pure-JAX reference (mirrors torch.nn.LSTM math) for correctness checking.
# ----------------------------------------------------------------------------
def lstm_model_reference(x_bti, layer_params, w_fc, b_fc):
    h_all = x_bti
    for (w_ih_t, w_hh_t, b_row) in layer_params:
        B = h_all.shape[0]
        H = w_hh_t.shape[0]

        def step(carry, x_t, w_ih_t=w_ih_t, w_hh_t=w_hh_t, b_row=b_row, H=H):
            h, c = carry
            gates = x_t @ w_ih_t + h @ w_hh_t + b_row
            i_g = jax.nn.sigmoid(gates[:, 0 * H:1 * H])
            f_g = jax.nn.sigmoid(gates[:, 1 * H:2 * H])
            g_g = jnp.tanh(gates[:, 2 * H:3 * H])
            o_g = jax.nn.sigmoid(gates[:, 3 * H:4 * H])
            c = f_g * c + i_g * g_g
            h = o_g * jnp.tanh(c)
            return (h, c), h

        init = (jnp.zeros((B, H), jnp.float32), jnp.zeros((B, H), jnp.float32))
        _, ys = jax.lax.scan(step, init, jnp.swapaxes(h_all, 0, 1))
        h_all = jnp.swapaxes(ys, 0, 1)
    return h_all[:, -1, :] @ w_fc + b_fc


if __name__ == "__main__":
    # Small shapes consistent with the module's forward.
    batch = 8
    seq = 8
    input_size = 8
    hidden_size = 32          # 4*L*H = 256 -> packed RHS matches v6e/v7x MXU width
    stacked_layers = 2

    key = jax.random.PRNGKey(0)
    k_x, key = jax.random.split(key)
    x = jax.random.normal(k_x, (batch, seq, input_size), dtype=jnp.float32)

    # Deterministic parameter init (same distribution spirit as nn.LSTM: U(-k, k)).
    bound = 1.0 / (hidden_size ** 0.5)
    layer_params = []
    for layer in range(stacked_layers):
        in_dim = input_size if layer == 0 else hidden_size
        k1, k2, k3, k4, key = jax.random.split(key, 5)
        w_ih = jax.random.uniform(k1, (4 * hidden_size, in_dim),
                                  minval=-bound, maxval=bound, dtype=jnp.float32)
        w_hh = jax.random.uniform(k2, (4 * hidden_size, hidden_size),
                                  minval=-bound, maxval=bound, dtype=jnp.float32)
        b_ih = jax.random.uniform(k3, (4 * hidden_size,),
                                  minval=-bound, maxval=bound, dtype=jnp.float32)
        b_hh = jax.random.uniform(k4, (4 * hidden_size,),
                                  minval=-bound, maxval=bound, dtype=jnp.float32)
        # Pre-transpose for x @ W layout and fold the two biases together.
        layer_params.append(
            (w_ih.T, w_hh.T, (b_ih + b_hh).reshape(1, 4 * hidden_size))
        )

    k5, k6, key = jax.random.split(key, 3)
    fc_bound = 1.0 / (hidden_size ** 0.5)
    w_fc = jax.random.uniform(k5, (hidden_size, 1),
                              minval=-fc_bound, maxval=fc_bound, dtype=jnp.float32)
    b_fc = jax.random.uniform(k6, (1, 1),
                              minval=-fc_bound, maxval=fc_bound, dtype=jnp.float32)

    layer_params = tuple(layer_params)

    out = lstm_model_forward(x, layer_params, w_fc, b_fc)
    out = jax.block_until_ready(out)

    ref = lstm_model_reference(x, layer_params, w_fc, b_fc)
    assert out.shape == (batch, 1), out.shape
    # f32 operands throughout; 1e-4 tolerance covers the (benign) change in
    # summation order from merging layer-2's input projection into the K=64
    # packed recurrent matmul.
    assert jnp.allclose(out, ref, atol=1e-4, rtol=1e-4), (out, ref)

    print("KERNEL_OK")
</pallas_src>

<mosaic_0001>
module attributes {stable_mosaic.version = 11 : i64} {
  func.func @kernel(%arg0: memref<8x8x8xf32, #tpu.memory_space<vmem>>, %arg1: memref<8x256xf32, #tpu.memory_space<vmem>>, %arg2: memref<1x256xf32, #tpu.memory_space<vmem>>, %arg3: memref<64x256xf32, #tpu.memory_space<vmem>>, %arg4: memref<32x1xf32, #tpu.memory_space<vmem>>, %arg5: memref<1x1xf32, #tpu.memory_space<vmem>>, %arg6: memref<8x1xf32, #tpu.memory_space<vmem>>) attributes {dimension_semantics = [], scalar_prefetch = 0 : i64, scratch_operands = 0 : i64, tpu.core_type = #tpu.core_type<tc>} {
    %0 = tpu.iota {dimensions = array<i32: 1>} : vector<8x256xi32>
    %c128_i32 = arith.constant 128 : i32
    %1 = vector.broadcast %c128_i32 : i32 to vector<8x256xi32>
    %2 = arith.cmpi sge, %0, %1 : vector<8x256xi32>
    %c192_i32 = arith.constant 192 : i32
    %3 = vector.broadcast %c192_i32 : i32 to vector<8x256xi32>
    %4 = arith.cmpi slt, %0, %3 : vector<8x256xi32>
    %5 = arith.andi %2, %4 : vector<8x256xi1>
    %cst = arith.constant 1.000000e+00 : f32
    %cst_0 = arith.constant 5.000000e-01 : f32
    %6 = vector.broadcast %cst : f32 to vector<8x256xf32>
    %7 = vector.broadcast %cst_0 : f32 to vector<8x256xf32>
    %8 = arith.select %5, %6, %7 : vector<8x256xi1>, vector<8x256xf32>
    %cst_1 = arith.constant 0.000000e+00 : f32
    %cst_2 = arith.constant 5.000000e-01 : f32
    %9 = vector.broadcast %cst_1 : f32 to vector<8x256xf32>
    %10 = vector.broadcast %cst_2 : f32 to vector<8x256xf32>
    %11 = arith.select %5, %9, %10 : vector<8x256xi1>, vector<8x256xf32>
    %c0 = arith.constant 0 : index
    %c0_3 = arith.constant 0 : index
    %c0_4 = arith.constant 0 : index
    %12 = vector.load %arg0[%c0, %c0_3, %c0_4] : memref<8x8x8xf32, #tpu.memory_space<vmem>>, vector<8x8x8xf32>
    %13 = vector.shape_cast %12 : vector<8x8x8xf32> to vector<64x8xf32>
    %c0_5 = arith.constant 0 : index
    %c0_6 = arith.constant 0 : index
    %14 = vector.load %arg1[%c0_5, %c0_6] : memref<8x256xf32, #tpu.memory_space<vmem>>, vector<8x256xf32>
    %cst_7 = arith.constant dense<0.000000e+00> : vector<64x256xf32>
    %15 = tpu.matmul %13, %14, %cst_7 {dimension_numbers = #tpu.dot_dimension_numbers<[1], [0], [0], [1], [0, 0, 1, 1], [], []>} : vector<64x8xf32>, vector<8x256xf32>, vector<64x256xf32> -> vector<64x256xf32>
    %c0_8 = arith.constant 0 : index
    %c0_9 = arith.constant 0 : index
    %16 = vector.load %arg2[%c0_8, %c0_9] : memref<1x256xf32, #tpu.memory_space<vmem>>, vector<1x256xf32>
    %17 = vector.broadcast %16 : vector<1x256xf32> to vector<64x256xf32>
    %18 = arith.addf %15, %17 : vector<64x256xf32>
    %c0_10 = arith.constant 0 : index
    %c0_11 = arith.constant 0 : index
    %19 = vector.load %arg3[%c0_10, %c0_11] : memref<64x256xf32, #tpu.memory_space<vmem>>, vector<64x256xf32>
    %cst_12 = arith.constant 0.000000e+00 : f32
    %20 = vector.broadcast %cst_12 : f32 to vector<8x64xf32>
    %21 = vector.extract_strided_slice %18 {offsets = [0, 0], sizes = [8, 256], strides = [1, 1]} : vector<64x256xf32> to vector<8x256xf32>
    %22 = arith.mulf %21, %8 : vector<8x256xf32>
    %23 = math.tanh %22 : vector<8x256xf32>
    %24 = arith.mulf %23, %8 : vector<8x256xf32>
    %25 = arith.addf %24, %11 : vector<8x256xf32>
    %26 = vector.extract_strided_slice %25 {offsets = [0, 0], sizes = [8, 64], strides = [1, 1]} : vector<8x256xf32> to vector<8x64xf32>
    %27 = vector.extract_strided_slice %25 {offsets = [0, 64], sizes = [8, 64], strides = [1, 1]} : vector<8x256xf32> to vector<8x64xf32>
    %28 = vector.extract_strided_slice %25 {offsets = [0, 128], sizes = [8, 64], strides = [1, 1]} : vector<8x256xf32> to vector<8x64xf32>
    %29 = vector.extract_strided_slice %25 {offsets = [0, 192], sizes = [8, 64], strides = [1, 1]} : vector<8x256xf32> to vector<8x64xf32>
    %30 = arith.mulf %27, %20 : vector<8x64xf32>
    %31 = arith.mulf %26, %28 : vector<8x64xf32>
    %32 = arith.addf %30, %31 : vector<8x64xf32>
    %33 = math.tanh %32 : vector<8x64xf32>
    %34 = arith.mulf %29, %33 : vector<8x64xf32>
    %35 = vector.extract_strided_slice %0 {offsets = [0, 0], sizes = [8, 64], strides = [1, 1]} : vector<8x256xi32> to vector<8x64xi32>
    %c32_i32 = arith.constant 32 : i32
    %36 = vector.broadcast %c32_i32 : i32 to vector<8x64xi32>
    %37 = arith.cmpi slt, %35, %36 : vector<8x64xi32>
    %38 = arith.extui %37 : vector<8x64xi1> to vector<8x64xi32>
    %39 = arith.sitofp %38 : vector<8x64xi32> to vector<8x64xf32>
    %40 = arith.mulf %34, %39 : vector<8x64xf32>
    %41 = arith.mulf %32, %39 : vector<8x64xf32>
    %42 = vector.extract_strided_slice %18 {offsets = [8, 0], sizes = [8, 256], strides = [1, 1]} : vector<64x256xf32> to vector<8x256xf32>
    %cst_13 = arith.constant dense<0.000000e+00> : vector<8x256xf32>
    %43 = tpu.matmul %40, %19, %cst_13 {dimension_numbers = #tpu.dot_dimension_numbers<[1], [0], [0], [1], [0, 0, 1, 1], [], []>} : vector<8x64xf32>, vector<64x256xf32>, vector<8x256xf32> -> vector<8x256xf32>
    %44 = arith.addf %42, %43 : vector<8x256xf32>
    %45 = arith.mulf %44, %8 : vector<8x256xf32>
    %46 = math.tanh %45 : vector<8x256xf32>
    %47 = arith.mulf %46, %8 : vector<8x256xf32>
    %48 = arith.addf %47, %11 : vector<8x256xf32>
    %49 = vector.extract_strided_slice %48 {offsets = [0, 0], sizes = [8, 64], strides = [1, 1]} : vector<8x256xf32> to vector<8x64xf32>
    %50 = vector.extract_strided_slice %48 {offsets = [0, 64], sizes = [8, 64], strides = [1, 1]} : vector<8x256xf32> to vector<8x64xf32>
    %51 = vector.extract_strided_slice %48 {offsets = [0, 128], sizes = [8, 64], strides = [1, 1]} : vector<8x256xf32> to vector<8x64xf32>
    %52 = vector.extract_strided_slice %48 {offsets = [0, 192], sizes = [8, 64], strides = [1, 1]} : vector<8x256xf32> to vector<8x64xf32>
    %53 = arith.mulf %50, %41 : vector<8x64xf32>
    %54 = arith.mulf %49, %51 : vector<8x64xf32>
    %55 = arith.addf %53, %54 : vector<8x64xf32>
    %56 = math.tanh %55 : vector<8x64xf32>
    %57 = arith.mulf %52, %56 : vector<8x64xf32>
    %58 = vector.extract_strided_slice %18 {offsets = [16, 0], sizes = [8, 256], strides = [1, 1]} : vector<64x256xf32> to vector<8x256xf32>
    %cst_14 = arith.constant dense<0.000000e+00> : vector<8x256xf32>
    %59 = tpu.matmul %57, %19, %cst_14 {dimension_numbers = #tpu.dot_dimension_numbers<[1], [0], [0], [1], [0, 0, 1, 1], [], []>} : vector<8x64xf32>, vector<64x256xf32>, vector<8x256xf32> -> vector<8x256xf32>
    %60 = arith.addf %58, %59 : vector<8x256xf32>
    %61 = arith.mulf %60, %8 : vector<8x256xf32>
    %62 = math.tanh %61 : vector<8x256xf32>
    %63 = arith.mulf %62, %8 : vector<8x256xf32>
    %64 = arith.addf %63, %11 : vector<8x256xf32>
    %65 = vector.extract_strided_slice %64 {offsets = [0, 0], sizes = [8, 64], strides = [1, 1]} : vector<8x256xf32> to vector<8x64xf32>
    %66 = vector.extract_strided_slice %64 {offsets = [0, 64], sizes = [8, 64], strides = [1, 1]} : vector<8x256xf32> to vector<8x64xf32>
    %67 = vector.extract_strided_slice %64 {offsets = [0, 128], sizes = [8, 64], strides = [1, 1]} : vector<8x256xf32> to vector<8x64xf32>
    %68 = vector.extract_strided_slice %64 {offsets = [0, 192], sizes = [8, 64], strides = [1, 1]} : vector<8x256xf32> to vector<8x64xf32>
    %69 = arith.mulf %66, %55 : vector<8x64xf32>
    %70 = arith.mulf %65, %67 : vector<8x64xf32>
    %71 = arith.addf %69, %70 : vector<8x64xf32>
    %72 = math.tanh %71 : vector<8x64xf32>
    %73 = arith.mulf %68, %72 : vector<8x64xf32>
    %74 = vector.extract_strided_slice %18 {offsets = [24, 0], sizes = [8, 256], strides = [1, 1]} : vector<64x256xf32> to vector<8x256xf32>
    %cst_15 = arith.constant dense<0.000000e+00> : vector<8x256xf32>
    %75 = tpu.matmul %73, %19, %cst_15 {dimension_numbers = #tpu.dot_dimension_numbers<[1], [0], [0], [1], [0, 0, 1, 1], [], []>} : vector<8x64xf32>, vector<64x256xf32>, vector<8x256xf32> -> vector<8x256xf32>
    %76 = arith.addf %74, %75 : vector<8x256xf32>
    %77 = arith.mulf %76, %8 : vector<8x256xf32>
    %78 = math.tanh %77 : vector<8x256xf32>
    %79 = arith.mulf %78, %8 : vector<8x256xf32>
    %80 = arith.addf %79, %11 : vector<8x256xf32>
    %81 = vector.extract_strided_slice %80 {offsets = [0, 0], sizes = [8, 64], strides = [1, 1]} : vector<8x256xf32> to vector<8x64xf32>
    %82 = vector.extract_strided_slice %80 {offsets = [0, 64], sizes = [8, 64], strides = [1, 1]} : vector<8x256xf32> to vector<8x64xf32>
    %83 = vector.extract_strided_slice %80 {offsets = [0, 128], sizes = [8, 64], strides = [1, 1]} : vector<8x256xf32> to vector<8x64xf32>
    %84 = vector.extract_strided_slice %80 {offsets = [0, 192], sizes = [8, 64], strides = [1, 1]} : vector<8x256xf32> to vector<8x64xf32>
    %85 = arith.mulf %82, %71 : vector<8x64xf32>
    %86 = arith.mulf %81, %83 : vector<8x64xf32>
    %87 = arith.addf %85, %86 : vector<8x64xf32>
    %88 = math.tanh %87 : vector<8x64xf32>
    %89 = arith.mulf %84, %88 : vector<8x64xf32>
    %90 = vector.extract_strided_slice %18 {offsets = [32, 0], sizes = [8, 256], strides = [1, 1]} : vector<64x256xf32> to vector<8x256xf32>
    %cst_16 = arith.constant dense<0.000000e+00> : vector<8x256xf32>
    %91 = tpu.matmul %89, %19, %cst_16 {dimension_numbers = #tpu.dot_dimension_numbers<[1], [0], [0], [1], [0, 0, 1, 1], [], []>} : vector<8x64xf32>, vector<64x256xf32>, vector<8x256xf32> -> vector<8x256xf32>
    %92 = arith.addf %90, %91 : vector<8x256xf32>
    %93 = arith.mulf %92, %8 : vector<8x256xf32>
    %94 = math.tanh %93 : vector<8x256xf32>
    %95 = arith.mulf %94, %8 : vector<8x256xf32>
    %96 = arith.addf %95, %11 : vector<8x256xf32>
    %97 = vector.extract_strided_slice %96 {offsets = [0, 0], sizes = [8, 64], strides = [1, 1]} : vector<8x256xf32> to vector<8x64xf32>
    %98 = vector.extract_strided_slice %96 {offsets = [0, 64], sizes = [8, 64], strides = [1, 1]} : vector<8x256xf32> to vector<8x64xf32>
    %99 = vector.extract_strided_slice %96 {offsets = [0, 128], sizes = [8, 64], strides = [1, 1]} : vector<8x256xf32> to vector<8x64xf32>
    %100 = vector.extract_strided_slice %96 {offsets = [0, 192], sizes = [8, 64], strides = [1, 1]} : vector<8x256xf32> to vector<8x64xf32>
    %101 = arith.mulf %98, %87 : vector<8x64xf32>
    %102 = arith.mulf %97, %99 : vector<8x64xf32>
    %103 = arith.addf %101, %102 : vector<8x64xf32>
    %104 = math.tanh %103 : vector<8x64xf32>
    %105 = arith.mulf %100, %104 : vector<8x64xf32>
    %106 = vector.extract_strided_slice %18 {offsets = [40, 0], sizes = [8, 256], strides = [1, 1]} : vector<64x256xf32> to vector<8x256xf32>
    %cst_17 = arith.constant dense<0.000000e+00> : vector<8x256xf32>
    %107 = tpu.matmul %105, %19, %cst_17 {dimension_numbers = #tpu.dot_dimension_numbers<[1], [0], [0], [1], [0, 0, 1, 1], [], []>} : vector<8x64xf32>, vector<64x256xf32>, vector<8x256xf32> -> vector<8x256xf32>
    %108 = arith.addf %106, %107 : vector<8x256xf32>
    %109 = arith.mulf %108, %8 : vector<8x256xf32>
    %110 = math.tanh %109 : vector<8x256xf32>
    %111 = arith.mulf %110, %8 : vector<8x256xf32>
    %112 = arith.addf %111, %11 : vector<8x256xf32>
    %113 = vector.extract_strided_slice %112 {offsets = [0, 0], sizes = [8, 64], strides = [1, 1]} : vector<8x256xf32> to vector<8x64xf32>
    %114 = vector.extract_strided_slice %112 {offsets = [0, 64], sizes = [8, 64], strides = [1, 1]} : vector<8x256xf32> to vector<8x64xf32>
    %115 = vector.extract_strided_slice %112 {offsets = [0, 128], sizes = [8, 64], strides = [1, 1]} : vector<8x256xf32> to vector<8x64xf32>
    %116 = vector.extract_strided_slice %112 {offsets = [0, 192], sizes = [8, 64], strides = [1, 1]} : vector<8x256xf32> to vector<8x64xf32>
    %117 = arith.mulf %114, %103 : vector<8x64xf32>
    %118 = arith.mulf %113, %115 : vector<8x64xf32>
    %119 = arith.addf %117, %118 : vector<8x64xf32>
    %120 = math.tanh %119 : vector<8x64xf32>
    %121 = arith.mulf %116, %120 : vector<8x64xf32>
    %122 = vector.extract_strided_slice %18 {offsets = [48, 0], sizes = [8, 256], strides = [1, 1]} : vector<64x256xf32> to vector<8x256xf32>
    %cst_18 = arith.constant dense<0.000000e+00> : vector<8x256xf32>
    %123 = tpu.matmul %121, %19, %cst_18 {dimension_numbers = #tpu.dot_dimension_numbers<[1], [0], [0], [1], [0, 0, 1, 1], [], []>} : vector<8x64xf32>, vector<64x256xf32>, vector<8x256xf32> -> vector<8x256xf32>
    %124 = arith.addf %122, %123 : vector<8x256xf32>
    %125 = arith.mulf %124, %8 : vector<8x256xf32>
    %126 = math.tanh %125 : vector<8x256xf32>
    %127 = arith.mulf %126, %8 : vector<8x256xf32>
    %128 = arith.addf %127, %11 : vector<8x256xf32>
    %129 = vector.extract_strided_slice %128 {offsets = [0, 0], sizes = [8, 64], strides = [1, 1]} : vector<8x256xf32> to vector<8x64xf32>
    %130 = vector.extract_strided_slice %128 {offsets = [0, 64], sizes = [8, 64], strides = [1, 1]} : vector<8x256xf32> to vector<8x64xf32>
    %131 = vector.extract_strided_slice %128 {offsets = [0, 128], sizes = [8, 64], strides = [1, 1]} : vector<8x256xf32> to vector<8x64xf32>
    %132 = vector.extract_strided_slice %128 {offsets = [0, 192], sizes = [8, 64], strides = [1, 1]} : vector<8x256xf32> to vector<8x64xf32>
    %133 = arith.mulf %130, %119 : vector<8x64xf32>
    %134 = arith.mulf %129, %131 : vector<8x64xf32>
    %135 = arith.addf %133, %134 : vector<8x64xf32>
    %136 = math.tanh %135 : vector<8x64xf32>
    %137 = arith.mulf %132, %136 : vector<8x64xf32>
    %138 = vector.extract_strided_slice %18 {offsets = [56, 0], sizes = [8, 256], strides = [1, 1]} : vector<64x256xf32> to vector<8x256xf32>
    %cst_19 = arith.constant dense<0.000000e+00> : vector<8x256xf32>
    %139 = tpu.matmul %137, %19, %cst_19 {dimension_numbers = #tpu.dot_dimension_numbers<[1], [0], [0], [1], [0, 0, 1, 1], [], []>} : vector<8x64xf32>, vector<64x256xf32>, vector<8x256xf32> -> vector<8x256xf32>
    %140 = arith.addf %138, %139 : vector<8x256xf32>
    %141 = arith.mulf %140, %8 : vector<8x256xf32>
    %142 = math.tanh %141 : vector<8x256xf32>
    %143 = arith.mulf %142, %8 : vector<8x256xf32>
    %144 = arith.addf %143, %11 : vector<8x256xf32>
    %145 = vector.extract_strided_slice %144 {offsets = [0, 0], sizes = [8, 64], strides = [1, 1]} : vector<8x256xf32> to vector<8x64xf32>
    %146 = vector.extract_strided_slice %144 {offsets = [0, 64], sizes = [8, 64], strides = [1, 1]} : vector<8x256xf32> to vector<8x64xf32>
    %147 = vector.extract_strided_slice %144 {offsets = [0, 128], sizes = [8, 64], strides = [1, 1]} : vector<8x256xf32> to vector<8x64xf32>
    %148 = vector.extract_strided_slice %144 {offsets = [0, 192], sizes = [8, 64], strides = [1, 1]} : vector<8x256xf32> to vector<8x64xf32>
    %149 = arith.mulf %146, %135 : vector<8x64xf32>
    %150 = arith.mulf %145, %147 : vector<8x64xf32>
    %151 = arith.addf %149, %150 : vector<8x64xf32>
    %152 = math.tanh %151 : vector<8x64xf32>
    %153 = arith.mulf %148, %152 : vector<8x64xf32>
    %154 = vector.extract_strided_slice %18 {offsets = [56, 0], sizes = [8, 256], strides = [1, 1]} : vector<64x256xf32> to vector<8x256xf32>
    %cst_20 = arith.constant dense<0.000000e+00> : vector<8x256xf32>
    %155 = tpu.matmul %153, %19, %cst_20 {dimension_numbers = #tpu.dot_dimension_numbers<[1], [0], [0], [1], [0, 0, 1, 1], [], []>} : vector<8x64xf32>, vector<64x256xf32>, vector<8x256xf32> -> vector<8x256xf32>
    %156 = arith.addf %154, %155 : vector<8x256xf32>
    %157 = arith.mulf %156, %8 : vector<8x256xf32>
    %158 = math.tanh %157 : vector<8x256xf32>
    %159 = arith.mulf %158, %8 : vector<8x256xf32>
    %160 = arith.addf %159, %11 : vector<8x256xf32>
    %161 = vector.extract_strided_slice %160 {offsets = [0, 0], sizes = [8, 64], strides = [1, 1]} : vector<8x256xf32> to vector<8x64xf32>
    %162 = vector.extract_strided_slice %160 {offsets = [0, 64], sizes = [8, 64], strides = [1, 1]} : vector<8x256xf32> to vector<8x64xf32>
    %163 = vector.extract_strided_slice %160 {offsets = [0, 128], sizes = [8, 64], strides = [1, 1]} : vector<8x256xf32> to vector<8x64xf32>
    %164 = vector.extract_strided_slice %160 {offsets = [0, 192], sizes = [8, 64], strides = [1, 1]} : vector<8x256xf32> to vector<8x64xf32>
    %165 = arith.mulf %162, %151 : vector<8x64xf32>
    %166 = arith.mulf %161, %163 : vector<8x64xf32>
    %167 = arith.addf %165, %166 : vector<8x64xf32>
    %168 = math.tanh %167 : vector<8x64xf32>
    %169 = arith.mulf %164, %168 : vector<8x64xf32>
    %170 = vector.extract_strided_slice %169 {offsets = [0, 32], sizes = [8, 32], strides = [1, 1]} : vector<8x64xf32> to vector<8x32xf32>
    %c0_21 = arith.constant 0 : index
    %c0_22 = arith.constant 0 : index
    %171 = vector.load %arg4[%c0_21, %c0_22] : memref<32x1xf32, #tpu.memory_space<vmem>>, vector<32x1xf32>
    %cst_23 = arith.constant dense<0.000000e+00> : vector<8x1xf32>
    %172 = tpu.matmul %170, %171, %cst_23 {dimension_numbers = #tpu.dot_dimension_numbers<[1], [0], [0], [1], [0, 0, 1, 1], [], []>} : vector<8x32xf32>, vector<32x1xf32>, vector<8x1xf32> -> vector<8x1xf32>
    %c0_24 = arith.constant 0 : index
    %c0_25 = arith.constant 0 : index
    %173 = vector.load %arg5[%c0_24, %c0_25] : memref<1x1xf32, #tpu.memory_space<vmem>>, vector<1x1xf32>
    %174 = vector.broadcast %173 : vector<1x1xf32> to vector<8x1xf32>
    %175 = arith.addf %172, %174 : vector<8x1xf32>
    %c0_26 = arith.constant 0 : index
    %c0_27 = arith.constant 0 : index
    %176 = vector.load %arg6[%c0_26, %c0_27] : memref<8x1xf32, #tpu.memory_space<vmem>>, vector<8x1xf32>
    tpu.vector_store %arg6[%c0_26, %c0_27], %175 {strides = array<i32>} : memref<8x1xf32, #tpu.memory_space<vmem>>, vector<8x1xf32>,
    return
  }
}

</mosaic_0001>

<llo_original>
// kernel: lstm_model_forward.1
$region0: #{lstm_model_forward.1}
  #allocation0 [shape = 'u32[]', space=smem, size = 0x4, offset = 0x4, fixed_abs, tag = 'smem constant byte address 0x4 - core index']
  #allocation1 [shape = 'u32[144,128]{1,0:T(1,128)}', space=vmem, size = 0x12000, scoped, tag = 'internal scratch']
  #allocation2 [shape = 'f32[1,1]{1,0:T(1,128)S(1)}', space=vmem, size = 0x200, scoped, tag = 'scoped memory for lstm_model_forward.1']
  %s0 = inlined_call_operand.vmem [shape: f32[8,8,8], index: 0, kind: input, shape index: {}]
  %s1 = inlined_call_operand.vmem [shape: f32[8,256], index: 1, kind: input, shape index: {}]
  %s2 = inlined_call_operand.vmem [shape: f32[1,256], index: 2, kind: input, shape index: {}]
  %s3 = inlined_call_operand.vmem [shape: f32[64,256], index: 3, kind: input, shape index: {}]
  %s4 = inlined_call_operand.vmem [shape: f32[32,1], index: 4, kind: input, shape index: {}]
  %s5 = inlined_call_operand.<no memory space> [shape: f32[1,1], index: 5, kind: input, shape index: {}]
  %s6 = inlined_call_operand.vmem [shape: f32[8,1], index: 6, kind: output, shape index: {}]
  %s7 = sld [smem:[#allocation0]]
  $region34: #{lstm_model_forward.1} parent=0
    _
  %s9 = ssub.s32 1, %s7
  %s10 = scalar_select 0, %s9, %s7
  %v11 = vstv %s5
  %12 = vst [vmem:[#allocation2] sm:$0x1] %v11
  // Predicated region
  $region2: #{lstm_model_forward.1} parent=0 // pred_check
    _
  $region3: #{lstm_model_forward.1} parent=0 // pred_check_branch
    %14 = sbr.rel (0) target = $region5
  $region4: #{lstm_model_forward.1} parent=0 // pred_region
    _
  $region5: #{lstm_model_forward.1} parent=0 // pred_fallthru
    _
  // Predicated region
  $region6: #{lstm_model_forward.1} parent=0 // pred_check
    _
  $region7: #{lstm_model_forward.1} parent=0 // pred_check_branch
    %16 = sbr.rel (0) target = $region9
  $region8: #{lstm_model_forward.1} parent=0 // pred_region
    _
  $region9: #{lstm_model_forward.1} parent=0 // pred_fallthru
    _
  // Predicated region
  $region10: #{lstm_model_forward.1} parent=0 // pred_check
    _
  $region11: #{lstm_model_forward.1} parent=0 // pred_check_branch
    %18 = sbr.rel (0) target = $region13
  $region12: #{lstm_model_forward.1} parent=0 // pred_region
    _
  $region13: #{lstm_model_forward.1} parent=0 // pred_fallthru
    _
  // Predicated region
  $region14: #{lstm_model_forward.1} parent=0 // pred_check
    _
  $region15: #{lstm_model_forward.1} parent=0 // pred_check_branch
    %20 = sbr.rel (0) target = $region17
  $region16: #{lstm_model_forward.1} parent=0 // pred_region
    _
  $region17: #{lstm_model_forward.1} parent=0 // pred_fallthru
    _
  // Predicated region
  $region18: #{lstm_model_forward.1} parent=0 // pred_check
    _
  $region19: #{lstm_model_forward.1} parent=0 // pred_check_branch
    %22 = sbr.rel (0) target = $region21
  $region20: #{lstm_model_forward.1} parent=0 // pred_region
    _
  $region21: #{lstm_model_forward.1} parent=0 // pred_fallthru
    _
  // Predicated region
  $region22: #{lstm_model_forward.1} parent=0 // pred_check
    _
  $region23: #{lstm_model_forward.1} parent=0 // pred_check_branch
    %24 = sbr.rel (0) target = $region25
  $region24: #{lstm_model_forward.1} parent=0 // pred_region
    _
  $region25: #{lstm_model_forward.1} parent=0 // pred_fallthru
    _
  %v25 = vlaneseq
  %v26 = vand.u32 %v25, 127
  %v27 = vadd.s32 %v26, 128
  %vm28 = vcmp.ge.s32.totalorder %v26, 128
  %vm29 = vcmp.ge.s32.totalorder %v27, 128
  %vm30 = vcmp.lt.s32.totalorder %v26, 192
  %vm31 = vcmp.lt.s32.totalorder %v27, 192
  %vm32 = vmand %vm28, %vm30
  %vm33 = vmand %vm29, %vm31
  %v34 = vsel %vm32, 1.0, 0.5
  %v35 = vsel %vm33, 1.0, 0.5
  %v36 = vsel %vm32, 0.0, 0.5
  %v37 = vsel %vm33, 0.0, 0.5
  %v38 = vld [vmem:[%s0] sm:$0xff]
  %v39 = vld [vmem:[%s0 + $0x8] sm:$0xff]
  %v40 = vld [vmem:[%s0 + $0x10] sm:$0xff]
  %v41 = vld [vmem:[%s0 + $0x18] sm:$0xff]
  %v42 = vld [vmem:[%s0 + $0x20] sm:$0xff]
  %v43 = vld [vmem:[%s0 + $0x28] sm:$0xff]
  %v44 = vld [vmem:[%s0 + $0x30] sm:$0xff]
  %v45 = vld [vmem:[%s0 + $0x38] sm:$0xff]
  %v46 = vld [vmem:[%s1] sm:$0xff]
  %v47 = vld [vmem:[%s1 + $0x8] sm:$0xff]
  %v48 = vld [vmem:[%s2] sm:$0x3]
  %v50 = vlaneseq
  %v51 = vshrl.u32 %v50, 7
  %v52 = vsub.s32 0, %v51
  %v53 = vrot.slane %v48, %v52
  %v54 = vlaneseq
  %v55 = vshrl.u32 %v54, 7
  %v56 = vsub.s32 1, %v55
  %v57 = vrot.slane %v48, %v56
  %vm60 = vcmask 64512
  %v62 = vsel %vm60, %v38, 0
  %v65 = vsel %vm60, %v39, 0
  %v68 = vsel %vm60, %v40, 0
  %v71 = vsel %vm60, %v41, 0
  %v74 = vsel %vm60, %v42, 0
  %v77 = vsel %vm60, %v43, 0
  %v80 = vsel %vm60, %v44, 0
  %v83 = vsel %vm60, %v45, 0
  %85 = vmatprep.subr.mxu0 %v47
  %86 = vmatpush1.msra.mxu0 %v46
  %87 = vmatprep.subr.mxu0 0.0
  %88 = vmatpush1.msra.mxu0 0.0
  %89 = vmatprep.subr.mxu0 0.0
  %90 = vmatpush1.msra.mxu0 0.0
  %91 = vmatprep.subr.mxu0 0.0
  %92 = vmatpush1.msra.mxu0 0.0
  %93 = vmatprep.subr.mxu0 0.0
  %94 = vmatpush1.msra.mxu0 0.0
  %95 = vmatprep.subr.mxu0 0.0
  %96 = vmatpush1.msra.mxu0 0.0
  %97 = vmatprep.subr.mxu0 0.0
  %98 = vmatpush1.msra.mxu0 0.0
  %99 = vmatprep.subr.mxu0 0.0
  %100 = vmatpush1.msra.mxu0 0.0
  %101 = vmatprep.subr.mxu0 0.0
  %102 = vmatpush1.msra.mxu0 0.0
  %103 = vmatprep.subr.mxu0 0.0
  %104 = vmatpush1.msra.mxu0 0.0
  %105 = vmatprep.subr.mxu0 0.0
  %106 = vmatpush1.msra.mxu0 0.0
  %107 = vmatprep.subr.mxu0 0.0
  %108 = vmatpush1.msra.mxu0 0.0
  %109 = vmatprep.subr.mxu0 0.0
  %110 = vmatpush1.msra.mxu0 0.0
  %111 = vmatprep.subr.mxu0 0.0
  %112 = vmatpush1.msra.mxu0 0.0
  %113 = vmatprep.subr.mxu0 0.0
  %114 = vmatpush1.msra.mxu0 0.0
  %115 = vmatprep.subr.mxu0 0.0
  %116 = vmatpush1.msra.mxu0 0.0
  %117 = vmatprep.subr.mxu0 0.0
  %118 = vmatpush1.msra.mxu0 0.0
  %119 = vmatprep.subr.mxu0 0.0
  %120 = vmatpush1.msra.mxu0 0.0
  %121 = vmatprep.subr.mxu0 0.0
  %122 = vmatpush1.msra.mxu0 0.0
  %123 = vmatprep.subr.mxu0 0.0
  %124 = vmatpush1.msra.mxu0 0.0
  %125 = vmatprep.subr.mxu0 0.0
  %126 = vmatpush1.msra.mxu0 0.0
  %127 = vmatprep.subr.mxu0 0.0
  %128 = vmatpush1.msra.mxu0 0.0
  %129 = vmatprep.subr.mxu0 0.0
  %130 = vmatpush1.msra.mxu0 0.0
  %131 = vmatprep.subr.mxu0 0.0
  %132 = vmatpush1.msra.mxu0 0.0
  %133 = vmatprep.subr.mxu0 0.0
  %134 = vmatpush1.msra.mxu0 0.0
  %135 = vmatprep.subr.mxu0 0.0
  %136 = vmatpush1.msra.mxu0 0.0
  %137 = vmatprep.subr.mxu0 0.0
  %138 = vmatpush1.msra.mxu0 0.0
  %139 = vmatprep.subr.mxu0 0.0
  %140 = vmatpush1.msra.mxu0 0.0
  %141 = vmatprep.subr.mxu0 0.0
  %142 = vmatpush1.msra.mxu0 0.0
  %143 = vmatprep.subr.mxu0 0.0
  %144 = vmatpush1.msra.mxu0 0.0
  %145 = vmatprep.subr.mxu0 0.0
  %146 = vmatpush1.msra.mxu0 0.0
  %147 = vmatprep.subr.mxu0 0.0
  %148 = vmatpush1.msra.mxu0 0.0
  %149 = vmatprep.mubr.f32.mxu0 0.0
  %150 = vmatmul.mubr.f32.gmra.mrb[0].mxu0 %v62
  %v151 = vpop.f32.mrb[0].mxu0
  %v152 = vadd.f32 %v53, %v151
  %v153 = vpop.f32.mrb[0].mxu0
  %v154 = vadd.f32 %v57, %v153
  %155 = vmatprep.mubr.f32.mxu0 0.0
  %156 = vmatmul.mubr.f32.gmra.mrb[0].mxu0 %v65
  %v157 = vpop.f32.mrb[0].mxu0
  %v158 = vadd.f32 %v53, %v157
  %v159 = vpop.f32.mrb[0].mxu0
  %v160 = vadd.f32 %v57, %v159
  %161 = vmatprep.mubr.f32.mxu0 0.0
  %162 = vmatmul.mubr.f32.gmra.mrb[0].mxu0 %v68
  %v163 = vpop.f32.mrb[0].mxu0
  %v164 = vadd.f32 %v53, %v163
  %v165 = vpop.f32.mrb[0].mxu0
  %v166 = vadd.f32 %v57, %v165
  %167 = vmatprep.mubr.f32.mxu0 0.0
  %168 = vmatmul.mubr.f32.gmra.mrb[0].mxu0 %v71
  %v169 = vpop.f32.mrb[0].mxu0
  %v170 = vadd.f32 %v53, %v169
  %v171 = vpop.f32.mrb[0].mxu0
  %v172 = vadd.f32 %v57, %v171
  %173 = vmatprep.mubr.f32.mxu0 0.0
  %174 = vmatmul.mubr.f32.gmra.mrb[0].mxu0 %v74
  %v175 = vpop.f32.mrb[0].mxu0
  %v176 = vadd.f32 %v53, %v175
  %v177 = vpop.f32.mrb[0].mxu0
  %v178 = vadd.f32 %v57, %v177
  %179 = vmatprep.mubr.f32.mxu0 0.0
  %180 = vmatmul.mubr.f32.gmra.mrb[0].mxu0 %v77
  %v181 = vpop.f32.mrb[0].mxu0
  %v182 = vadd.f32 %v53, %v181
  %v183 = vpop.f32.mrb[0].mxu0
  %v184 = vadd.f32 %v57, %v183
  %185 = vmatprep.mubr.f32.mxu0 0.0
  %186 = vmatmul.mubr.f32.gmra.mrb[0].mxu0 %v80
  %v187 = vpop.f32.mrb[0].mxu0
  %v188 = vadd.f32 %v53, %v187
  %v189 = vpop.f32.mrb[0].mxu0
  %v190 = vadd.f32 %v57, %v189
  %191 = vmatprep.mubr.f32.mxu0 0.0
  %192 = vmatmul.mubr.f32.gmra.mrb[0].mxu0 %v83
  %v193 = vpop.f32.mrb[0].mxu0
  %v194 = vadd.f32 %v53, %v193
  %v195 = vpop.f32.mrb[0].mxu0
  %v196 = vadd.f32 %v57, %v195
  %197 = vdwg.mxu0
  %v198 = vld [vmem:[%s3] sm:$0xff]
  %v199 = vld [vmem:[%s3 + $0x8] sm:$0xff]
  %v200 = vld [vmem:[%s3 + $0x10] sm:$0xff]
  %v201 = vld [vmem:[%s3 + $0x18] sm:$0xff]
  %v202 = vld [vmem:[%s3 + $0x20] sm:$0xff]
  %v203 = vld [vmem:[%s3 + $0x28] sm:$0xff]
  %v204 = vld [vmem:[%s3 + $0x30] sm:$0xff]
  %v205 = vld [vmem:[%s3 + $0x38] sm:$0xff]
  %v206 = vld [vmem:[%s3 + $0x40] sm:$0xff]
  %v207 = vld [vmem:[%s3 + $0x48] sm:$0xff]
  %v208 = vld [vmem:[%s3 + $0x50] sm:$0xff]
  %v209 = vld [vmem:[%s3 + $0x58] sm:$0xff]
  %v210 = vld [vmem:[%s3 + $0x60] sm:$0xff]
  %v211 = vld [vmem:[%s3 + $0x68] sm:$0xff]
  %v212 = vld [vmem:[%s3 + $0x70] sm:$0xff]
  %v213 = vld [vmem:[%s3 + $0x78] sm:$0xff]
  %v214 = vmul.f32 %v152, %v34
  %v215 = vmul.f32 %v154, %v35
  %v216 = vtanh.pop %v214
  %v217 = vtanh.pop %v215
  %v218 = vmul.f32 %v216, %v34
  %v219 = vmul.f32 %v217, %v35
  %v220 = vadd.f32 %v218, %v36
  %v221 = vadd.f32 %v219, %v37
  %v222 = vmul.f32 %v220, 0.0
  %v223 = vmul.f32 %v220, %v221
  %225 = vrot.lane.b32.xlu0 %v223, 64
  %v226 = vpop.permute.xlu0 %225
  %v228 = vadd.f32 %v222, %v226
  %v229 = vtanh.pop %v228
  %v230 = vmul.f32 %v221, %v229
  %vm231 = vcmp.lt.s32.totalorder %v26, 32
  %v232 = vsel %vm231, 1, 0
  %v233 = vcvt.s32.f32 %v232
  %235 = vrot.lane.b32.xlu0 %v233, 64
  %v236 = vpop.permute.xlu0 %235
  %v238 = vmul.f32 %v230, %v236
  %v239 = vmul.f32 %v228, %v236
  %241 = vrot.lane.b32.xlu0 %v238, 64
  %v242 = vpop.permute.xlu0 %241
  %vm243 = vcmask 523264
  %v244 = vsel %vm243, %v242, 0
  %246 = vmatprep.subr.mxu0 %v199
  %247 = vmatpush1.msra.mxu0 %v198
  %248 = vmatprep.subr.mxu0 %v201
  %249 = vmatpush1.msra.mxu0 %v200
  %250 = vmatprep.subr.mxu0 %v203
  %251 = vmatpush1.msra.mxu0 %v202
  %252 = vmatprep.subr.mxu0 %v205
  %253 = vmatpush1.msra.mxu0 %v204
  %254 = vmatprep.subr.mxu0 %v207
  %255 = vmatpush1.msra.mxu0 %v206
  %256 = vmatprep.subr.mxu0 %v209
  %257 = vmatpush1.msra.mxu0 %v208
  %258 = vmatprep.subr.mxu0 %v211
  %259 = vmatpush1.msra.mxu0 %v210
  %260 = vmatprep.subr.mxu0 %v213
  %261 = vmatpush1.msra.mxu0 %v212
  %262 = vmatprep.subr.mxu0 0.0
  %263 = vmatpush1.msra.mxu0 0.0
  %264 = vmatprep.subr.mxu0 0.0
  %265 = vmatpush1.msra.mxu0 0.0
  %266 = vmatprep.subr.mxu0 0.0
  %267 = vmatpush1.msra.mxu0 0.0
  %268 = vmatprep.subr.mxu0 0.0
  %269 = vmatpush1.msra.mxu0 0.0
  %270 = vmatprep.subr.mxu0 0.0
  %271 = vmatpush1.msra.mxu0 0.0
  %272 = vmatprep.subr.mxu0 0.0
  %273 = vmatpush1.msra.mxu0 0.0
  %274 = vmatprep.subr.mxu0 0.0
  %275 = vmatpush1.msra.mxu0 0.0
  %276 = vmatprep.subr.mxu0 0.0
  %277 = vmatpush1.msra.mxu0 0.0
  %278 = vmatprep.subr.mxu0 0.0
  %279 = vmatpush1.msra.mxu0 0.0
  %280 = vmatprep.subr.mxu0 0.0
  %281 = vmatpush1.msra.mxu0 0.0
  %282 = vmatprep.subr.mxu0 0.0
  %283 = vmatpush1.msra.mxu0 0.0
  %284 = vmatprep.subr.mxu0 0.0
  %285 = vmatpush1.msra.mxu0 0.0
  %286 = vmatprep.subr.mxu0 0.0
  %287 = vmatpush1.msra.mxu0 0.0
  %288 = vmatprep.subr.mxu0 0.0
  %289 = vmatpush1.msra.mxu0 0.0
  %290 = vmatprep.subr.mxu0 0.0
  %291 = vmatpush1.msra.mxu0 0.0
  %292 = vmatprep.subr.mxu0 0.0
  %293 = vmatpush1.msra.mxu0 0.0
  %294 = vmatprep.subr.mxu0 0.0
  %295 = vmatpush1.msra.mxu0 0.0
  %296 = vmatprep.subr.mxu0 0.0
  %297 = vmatpush1.msra.mxu0 0.0
  %298 = vmatprep.subr.mxu0 0.0
  %299 = vmatpush1.msra.mxu0 0.0
  %300 = vmatprep.subr.mxu0 0.0
  %301 = vmatpush1.msra.mxu0 0.0
  %302 = vmatprep.subr.mxu0 0.0
  %303 = vmatpush1.msra.mxu0 0.0
  %304 = vmatprep.subr.mxu0 0.0
  %305 = vmatpush1.msra.mxu0 0.0
  %306 = vmatprep.subr.mxu0 0.0
  %307 = vmatpush1.msra.mxu0 0.0
  %308 = vmatprep.subr.mxu0 0.0
  %309 = vmatpush1.msra.mxu0 0.0
  %310 = vmatprep.mubr.f32.mxu0 0.0
  %311 = vmatmul.mubr.f32.gmra.mrb[0].mxu0 %v244
  %v312 = vpop.f32.mrb[0].mxu0
  %v313 = vadd.f32 0.0, %v312
  %v314 = vpop.f32.mrb[0].mxu0
  %v315 = vadd.f32 0.0, %v314
  %316 = vdwg.mxu0
  %v317 = vadd.f32 %v158, %v313
  %v318 = vadd.f32 %v160, %v315
  %v319 = vmul.f32 %v317, %v34
  %v320 = vmul.f32 %v318, %v35
  %v321 = vtanh.pop %v319
  %v322 = vtanh.pop %v320
  %v323 = vmul.f32 %v321, %v34
  %v324 = vmul.f32 %v322, %v35
  %v325 = vadd.f32 %v323, %v36
  %v326 = vadd.f32 %v324, %v37
  %v327 = vmul.f32 %v325, %v239
  %v328 = vmul.f32 %v325, %v326
  %330 = vrot.lane.b32.xlu0 %v328, 64
  %v331 = vpop.permute.xlu0 %330
  %v333 = vadd.f32 %v327, %v331
  %v334 = vtanh.pop %v333
  %v335 = vmul.f32 %v326, %v334
  %337 = vrot.lane.b32.xlu0 %v335, 64
  %v338 = vpop.permute.xlu0 %337
  %v339 = vsel %vm243, %v338, 0
  %341 = vmatprep.subr.mxu0 %v199
  %342 = vmatpush1.msra.mxu0 %v198
  %343 = vmatprep.subr.mxu0 %v201
  %344 = vmatpush1.msra.mxu0 %v200
  %345 = vmatprep.subr.mxu0 %v203
  %346 = vmatpush1.msra.mxu0 %v202
  %347 = vmatprep.subr.mxu0 %v205
  %348 = vmatpush1.msra.mxu0 %v204
  %349 = vmatprep.subr.mxu0 %v207
  %350 = vmatpush1.msra.mxu0 %v206
  %351 = vmatprep.subr.mxu0 %v209
  %352 = vmatpush1.msra.mxu0 %v208
  %353 = vmatprep.subr.mxu0 %v211
  %354 = vmatpush1.msra.mxu0 %v210
  %355 = vmatprep.subr.mxu0 %v213
  %356 = vmatpush1.msra.mxu0 %v212
  %357 = vmatprep.subr.mxu0 0.0
  %358 = vmatpush1.msra.mxu0 0.0
  %359 = vmatprep.subr.mxu0 0.0
  %360 = vmatpush1.msra.mxu0 0.0
  %361 = vmatprep.subr.mxu0 0.0
  %362 = vmatpush1.msra.mxu0 0.0
  %363 = vmatprep.subr.mxu0 0.0
  %364 = vmatpush1.msra.mxu0 0.0
  %365 = vmatprep.subr.mxu0 0.0
  %366 = vmatpush1.msra.mxu0 0.0
  %367 = vmatprep.subr.mxu0 0.0
  %368 = vmatpush1.msra.mxu0 0.0
  %369 = vmatprep.subr.mxu0 0.0
  %370 = vmatpush1.msra.mxu0 0.0
  %371 = vmatprep.subr.mxu0 0.0
  %372 = vmatpush1.msra.mxu0 0.0
  %373 = vmatprep.subr.mxu0 0.0
  %374 = vmatpush1.msra.mxu0 0.0
  %375 = vmatprep.subr.mxu0 0.0
  %376 = vmatpush1.msra.mxu0 0.0
  %377 = vmatprep.subr.mxu0 0.0
  %378 = vmatpush1.msra.mxu0 0.0
  %379 = vmatprep.subr.mxu0 0.0
  %380 = vmatpush1.msra.mxu0 0.0
  %381 = vmatprep.subr.mxu0 0.0
  %382 = vmatpush1.msra.mxu0 0.0
  %383 = vmatprep.subr.mxu0 0.0
  %384 = vmatpush1.msra.mxu0 0.0
  %385 = vmatprep.subr.mxu0 0.0
  %386 = vmatpush1.msra.mxu0 0.0
  %387 = vmatprep.subr.mxu0 0.0
  %388 = vmatpush1.msra.mxu0 0.0
  %389 = vmatprep.subr.mxu0 0.0
  %390 = vmatpush1.msra.mxu0 0.0
  %391 = vmatprep.subr.mxu0 0.0
  %392 = vmatpush1.msra.mxu0 0.0
  %393 = vmatprep.subr.mxu0 0.0
  %394 = vmatpush1.msra.mxu0 0.0
  %395 = vmatprep.subr.mxu0 0.0
  %396 = vmatpush1.msra.mxu0 0.0
  %397 = vmatprep.subr.mxu0 0.0
  %398 = vmatpush1.msra.mxu0 0.0
  %399 = vmatprep.subr.mxu0 0.0
  %400 = vmatpush1.msra.mxu0 0.0
  %401 = vmatprep.subr.mxu0 0.0
  %402 = vmatpush1.msra.mxu0 0.0
  %403 = vmatprep.subr.mxu0 0.0
  %404 = vmatpush1.msra.mxu0 0.0
  %405 = vmatprep.mubr.f32.mxu0 0.0
  %406 = vmatmul.mubr.f32.gmra.mrb[0].mxu0 %v339
  %v407 = vpop.f32.mrb[0].mxu0
  %v408 = vadd.f32 0.0, %v407
  %v409 = vpop.f32.mrb[0].mxu0
  %v410 = vadd.f32 0.0, %v409
  %411 = vdwg.mxu0
  %v412 = vadd.f32 %v164, %v408
  %v413 = vadd.f32 %v166, %v410
  %v414 = vmul.f32 %v412, %v34
  %v415 = vmul.f32 %v413, %v35
  %v416 = vtanh.pop %v414
  %v417 = vtanh.pop %v415
  %v418 = vmul.f32 %v416, %v34
  %v419 = vmul.f32 %v417, %v35
  %v420 = vadd.f32 %v418, %v36
  %v421 = vadd.f32 %v419, %v37
  %v422 = vmul.f32 %v420, %v333
  %v423 = vmul.f32 %v420, %v421
  %425 = vrot.lane.b32.xlu0 %v423, 64
  %v426 = vpop.permute.xlu0 %425
  %v428 = vadd.f32 %v422, %v426
  %v429 = vtanh.pop %v428
  %v430 = vmul.f32 %v421, %v429
  %432 = vrot.lane.b32.xlu0 %v430, 64
  %v433 = vpop.permute.xlu0 %432
  %v434 = vsel %vm243, %v433, 0
  %436 = vmatprep.subr.mxu0 %v199
  %437 = vmatpush1.msra.mxu0 %v198
  %438 = vmatprep.subr.mxu0 %v201
  %439 = vmatpush1.msra.mxu0 %v200
  %440 = vmatprep.subr.mxu0 %v203
  %441 = vmatpush1.msra.mxu0 %v202
  %442 = vmatprep.subr.mxu0 %v205
  %443 = vmatpush1.msra.mxu0 %v204
  %444 = vmatprep.subr.mxu0 %v207
  %445 = vmatpush1.msra.mxu0 %v206
  %446 = vmatprep.subr.mxu0 %v209
  %447 = vmatpush1.msra.mxu0 %v208
  %448 = vmatprep.subr.mxu0 %v211
  %449 = vmatpush1.msra.mxu0 %v210
  %450 = vmatprep.subr.mxu0 %v213
  %451 = vmatpush1.msra.mxu0 %v212
  %452 = vmatprep.subr.mxu0 0.0
  %453 = vmatpush1.msra.mxu0 0.0
  %454 = vmatprep.subr.mxu0 0.0
  %455 = vmatpush1.msra.mxu0 0.0
  %456 = vmatprep.subr.mxu0 0.0
  %457 = vmatpush1.msra.mxu0 0.0
  %458 = vmatprep.subr.mxu0 0.0
  %459 = vmatpush1.msra.mxu0 0.0
  %460 = vmatprep.subr.mxu0 0.0
  %461 = vmatpush1.msra.mxu0 0.0
  %462 = vmatprep.subr.mxu0 0.0
  %463 = vmatpush1.msra.mxu0 0.0
  %464 = vmatprep.subr.mxu0 0.0
  %465 = vmatpush1.msra.mxu0 0.0
  %466 = vmatprep.subr.mxu0 0.0
  %467 = vmatpush1.msra.mxu0 0.0
  %468 = vmatprep.subr.mxu0 0.0
  %469 = vmatpush1.msra.mxu0 0.0
  %470 = vmatprep.subr.mxu0 0.0
  %471 = vmatpush1.msra.mxu0 0.0
  %472 = vmatprep.subr.mxu0 0.0
  %473 = vmatpush1.msra.mxu0 0.0
  %474 = vmatprep.subr.mxu0 0.0
  %475 = vmatpush1.msra.mxu0 0.0
  %476 = vmatprep.subr.mxu0 0.0
  %477 = vmatpush1.msra.mxu0 0.0
  %478 = vmatprep.subr.mxu0 0.0
  %479 = vmatpush1.msra.mxu0 0.0
  %480 = vmatprep.subr.mxu0 0.0
  %481 = vmatpush1.msra.mxu0 0.0
  %482 = vmatprep.subr.mxu0 0.0
  %483 = vmatpush1.msra.mxu0 0.0
  %484 = vmatprep.subr.mxu0 0.0
  %485 = vmatpush1.msra.mxu0 0.0
  %486 = vmatprep.subr.mxu0 0.0
  %487 = vmatpush1.msra.mxu0 0.0
  %488 = vmatprep.subr.mxu0 0.0
  %489 = vmatpush1.msra.mxu0 0.0
  %490 = vmatprep.subr.mxu0 0.0
  %491 = vmatpush1.msra.mxu0 0.0
  %492 = vmatprep.subr.mxu0 0.0
  %493 = vmatpush1.msra.mxu0 0.0
  %494 = vmatprep.subr.mxu0 0.0
  %495 = vmatpush1.msra.mxu0 0.0
  %496 = vmatprep.subr.mxu0 0.0
  %497 = vmatpush1.msra.mxu0 0.0
  %498 = vmatprep.subr.mxu0 0.0
  %499 = vmatpush1.msra.mxu0 0.0
  %500 = vmatprep.mubr.f32.mxu0 0.0
  %501 = vmatmul.mubr.f32.gmra.mrb[0].mxu0 %v434
  %v502 = vpop.f32.mrb[0].mxu0
  %v503 = vadd.f32 0.0, %v502
  %v504 = vpop.f32.mrb[0].mxu0
  %v505 = vadd.f32 0.0, %v504
  %506 = vdwg.mxu0
  %v507 = vadd.f32 %v170, %v503
  %v508 = vadd.f32 %v172, %v505
  %v509 = vmul.f32 %v507, %v34
  %v510 = vmul.f32 %v508, %v35
  %v511 = vtanh.pop %v509
  %v512 = vtanh.pop %v510
  %v513 = vmul.f32 %v511, %v34
  %v514 = vmul.f32 %v512, %v35
  %v515 = vadd.f32 %v513, %v36
  %v516 = vadd.f32 %v514, %v37
  %v517 = vmul.f32 %v515, %v428
  %v518 = vmul.f32 %v515, %v516
  %520 = vrot.lane.b32.xlu0 %v518, 64
  %v521 = vpop.permute.xlu0 %520
  %v523 = vadd.f32 %v517, %v521
  %v524 = vtanh.pop %v523
  %v525 = vmul.f32 %v516, %v524
  %527 = vrot.lane.b32.xlu0 %v525, 64
  %v528 = vpop.permute.xlu0 %527
  %v529 = vsel %vm243, %v528, 0
  %531 = vmatprep.subr.mxu0 %v199
  %532 = vmatpush1.msra.mxu0 %v198
  %533 = vmatprep.subr.mxu0 %v201
  %534 = vmatpush1.msra.mxu0 %v200
  %535 = vmatprep.subr.mxu0 %v203
  %536 = vmatpush1.msra.mxu0 %v202
  %537 = vmatprep.subr.mxu0 %v205
  %538 = vmatpush1.msra.mxu0 %v204
  %539 = vmatprep.subr.mxu0 %v207
  %540 = vmatpush1.msra.mxu0 %v206
  %541 = vmatprep.subr.mxu0 %v209
  %542 = vmatpush1.msra.mxu0 %v208
  %543 = vmatprep.subr.mxu0 %v211
  %544 = vmatpush1.msra.mxu0 %v210
  %545 = vmatprep.subr.mxu0 %v213
  %546 = vmatpush1.msra.mxu0 %v212
  %547 = vmatprep.subr.mxu0 0.0
  %548 = vmatpush1.msra.mxu0 0.0
  %549 = vmatprep.subr.mxu0 0.0
  %550 = vmatpush1.msra.mxu0 0.0
  %551 = vmatprep.subr.mxu0 0.0
  %552 = vmatpush1.msra.mxu0 0.0
  %553 = vmatprep.subr.mxu0 0.0
  %554 = vmatpush1.msra.mxu0 0.0
  %555 = vmatprep.subr.mxu0 0.0
  %556 = vmatpush1.msra.mxu0 0.0
  %557 = vmatprep.subr.mxu0 0.0
  %558 = vmatpush1.msra.mxu0 0.0
  %559 = vmatprep.subr.mxu0 0.0
  %560 = vmatpush1.msra.mxu0 0.0
  %561 = vmatprep.subr.mxu0 0.0
  %562 = vmatpush1.msra.mxu0 0.0
  %563 = vmatprep.subr.mxu0 0.0
  %564 = vmatpush1.msra.mxu0 0.0
  %565 = vmatprep.subr.mxu0 0.0
  %566 = vmatpush1.msra.mxu0 0.0
  %567 = vmatprep.subr.mxu0 0.0
  %568 = vmatpush1.msra.mxu0 0.0
  %569 = vmatprep.subr.mxu0 0.0
  %570 = vmatpush1.msra.mxu0 0.0
  %571 = vmatprep.subr.mxu0 0.0
  %572 = vmatpush1.msra.mxu0 0.0
  %573 = vmatprep.subr.mxu0 0.0
  %574 = vmatpush1.msra.mxu0 0.0
  %575 = vmatprep.subr.mxu0 0.0
  %576 = vmatpush1.msra.mxu0 0.0
  %577 = vmatprep.subr.mxu0 0.0
  %578 = vmatpush1.msra.mxu0 0.0
  %579 = vmatprep.subr.mxu0 0.0
  %580 = vmatpush1.msra.mxu0 0.0
  %581 = vmatprep.subr.mxu0 0.0
  %582 = vmatpush1.msra.mxu0 0.0
  %583 = vmatprep.subr.mxu0 0.0
  %584 = vmatpush1.msra.mxu0 0.0
  %585 = vmatprep.subr.mxu0 0.0
  %586 = vmatpush1.msra.mxu0 0.0
  %587 = vmatprep.subr.mxu0 0.0
  %588 = vmatpush1.msra.mxu0 0.0
  %589 = vmatprep.subr.mxu0 0.0
  %590 = vmatpush1.msra.mxu0 0.0
  %591 = vmatprep.subr.mxu0 0.0
  %592 = vmatpush1.msra.mxu0 0.0
  %593 = vmatprep.subr.mxu0 0.0
  %594 = vmatpush1.msra.mxu0 0.0
  %595 = vmatprep.mubr.f32.mxu0 0.0
  %596 = vmatmul.mubr.f32.gmra.mrb[0].mxu0 %v529
  %v597 = vpop.f32.mrb[0].mxu0
  %v598 = vadd.f32 0.0, %v597
  %v599 = vpop.f32.mrb[0].mxu0
  %v600 = vadd.f32 0.0, %v599
  %601 = vdwg.mxu0
  %v602 = vadd.f32 %v176, %v598
  %v603 = vadd.f32 %v178, %v600
  %v604 = vmul.f32 %v602, %v34
  %v605 = vmul.f32 %v603, %v35
  %v606 = vtanh.pop %v604
  %v607 = vtanh.pop %v605
  %v608 = vmul.f32 %v606, %v34
  %v609 = vmul.f32 %v607, %v35
  %v610 = vadd.f32 %v608, %v36
  %v611 = vadd.f32 %v609, %v37
  %v612 = vmul.f32 %v610, %v523
  %v613 = vmul.f32 %v610, %v611
  %615 = vrot.lane.b32.xlu0 %v613, 64
  %v616 = vpop.permute.xlu0 %615
  %v618 = vadd.f32 %v612, %v616
  %v619 = vtanh.pop %v618
  %v620 = vmul.f32 %v611, %v619
  %622 = vrot.lane.b32.xlu0 %v620, 64
  %v623 = vpop.permute.xlu0 %622
  %v624 = vsel %vm243, %v623, 0
  %626 = vmatprep.subr.mxu0 %v199
  %627 = vmatpush1.msra.mxu0 %v198
  %628 = vmatprep.subr.mxu0 %v201
  %629 = vmatpush1.msra.mxu0 %v200
  %630 = vmatprep.subr.mxu0 %v203
  %631 = vmatpush1.msra.mxu0 %v202
  %632 = vmatprep.subr.mxu0 %v205
  %633 = vmatpush1.msra.mxu0 %v204
  %634 = vmatprep.subr.mxu0 %v207
  %635 = vmatpush1.msra.mxu0 %v206
  %636 = vmatprep.subr.mxu0 %v209
  %637 = vmatpush1.msra.mxu0 %v208
  %638 = vmatprep.subr.mxu0 %v211
  %639 = vmatpush1.msra.mxu0 %v210
  %640 = vmatprep.subr.mxu0 %v213
  %641 = vmatpush1.msra.mxu0 %v212
  %642 = vmatprep.subr.mxu0 0.0
  %643 = vmatpush1.msra.mxu0 0.0
  %644 = vmatprep.subr.mxu0 0.0
  %645 = vmatpush1.msra.mxu0 0.0
  %646 = vmatprep.subr.mxu0 0.0
  %647 = vmatpush1.msra.mxu0 0.0
  %648 = vmatprep.subr.mxu0 0.0
  %649 = vmatpush1.msra.mxu0 0.0
  %650 = vmatprep.subr.mxu0 0.0
  %651 = vmatpush1.msra.mxu0 0.0
  %652 = vmatprep.subr.mxu0 0.0
  %653 = vmatpush1.msra.mxu0 0.0
  %654 = vmatprep.subr.mxu0 0.0
  %655 = vmatpush1.msra.mxu0 0.0
  %656 = vmatprep.subr.mxu0 0.0
  %657 = vmatpush1.msra.mxu0 0.0
  %658 = vmatprep.subr.mxu0 0.0
  %659 = vmatpush1.msra.mxu0 0.0
  %660 = vmatprep.subr.mxu0 0.0
  %661 = vmatpush1.msra.mxu0 0.0
  %662 = vmatprep.subr.mxu0 0.0
  %663 = vmatpush1.msra.mxu0 0.0
  %664 = vmatprep.subr.mxu0 0.0
  %665 = vmatpush1.msra.mxu0 0.0
  %666 = vmatprep.subr.mxu0 0.0
  %667 = vmatpush1.msra.mxu0 0.0
  %668 = vmatprep.subr.mxu0 0.0
  %669 = vmatpush1.msra.mxu0 0.0
  %670 = vmatprep.subr.mxu0 0.0
  %671 = vmatpush1.msra.mxu0 0.0
  %672 = vmatprep.subr.mxu0 0.0
  %673 = vmatpush1.msra.mxu0 0.0
  %674 = vmatprep.subr.mxu0 0.0
  %675 = vmatpush1.msra.mxu0 0.0
  %676 = vmatprep.subr.mxu0 0.0
  %677 = vmatpush1.msra.mxu0 0.0
  %678 = vmatprep.subr.mxu0 0.0
  %679 = vmatpush1.msra.mxu0 0.0
  %680 = vmatprep.subr.mxu0 0.0
  %681 = vmatpush1.msra.mxu0 0.0
  %682 = vmatprep.subr.mxu0 0.0
  %683 = vmatpush1.msra.mxu0 0.0
  %684 = vmatprep.subr.mxu0 0.0
  %685 = vmatpush1.msra.mxu0 0.0
  %686 = vmatprep.subr.mxu0 0.0
  %687 = vmatpush1.msra.mxu0 0.0
  %688 = vmatprep.subr.mxu0 0.0
  %689 = vmatpush1.msra.mxu0 0.0
  %690 = vmatprep.mubr.f32.mxu0 0.0
  %691 = vmatmul.mubr.f32.gmra.mrb[0].mxu0 %v624
  %v692 = vpop.f32.mrb[0].mxu0
  %v693 = vadd.f32 0.0, %v692
  %v694 = vpop.f32.mrb[0].mxu0
  %v695 = vadd.f32 0.0, %v694
  %696 = vdwg.mxu0
  %v697 = vadd.f32 %v182, %v693
  %v698 = vadd.f32 %v184, %v695
  %v699 = vmul.f32 %v697, %v34
  %v700 = vmul.f32 %v698, %v35
  %v701 = vtanh.pop %v699
  %v702 = vtanh.pop %v700
  %v703 = vmul.f32 %v701, %v34
  %v704 = vmul.f32 %v702, %v35
  %v705 = vadd.f32 %v703, %v36
  %v706 = vadd.f32 %v704, %v37
  %v707 = vmul.f32 %v705, %v618
  %v708 = vmul.f32 %v705, %v706
  %710 = vrot.lane.b32.xlu0 %v708, 64
  %v711 = vpop.permute.xlu0 %710
  %v713 = vadd.f32 %v707, %v711
  %v714 = vtanh.pop %v713
  %v715 = vmul.f32 %v706, %v714
  %717 = vrot.lane.b32.xlu0 %v715, 64
  %v718 = vpop.permute.xlu0 %717
  %v719 = vsel %vm243, %v718, 0
  %721 = vmatprep.subr.mxu0 %v199
  %722 = vmatpush1.msra.mxu0 %v198
  %723 = vmatprep.subr.mxu0 %v201
  %724 = vmatpush1.msra.mxu0 %v200
  %725 = vmatprep.subr.mxu0 %v203
  %726 = vmatpush1.msra.mxu0 %v202
  %727 = vmatprep.subr.mxu0 %v205
  %728 = vmatpush1.msra.mxu0 %v204
  %729 = vmatprep.subr.mxu0 %v207
  %730 = vmatpush1.msra.mxu0 %v206
  %731 = vmatprep.subr.mxu0 %v209
  %732 = vmatpush1.msra.mxu0 %v208
  %733 = vmatprep.subr.mxu0 %v211
  %734 = vmatpush1.msra.mxu0 %v210
  %735 = vmatprep.subr.mxu0 %v213
  %736 = vmatpush1.msra.mxu0 %v212
  %737 = vmatprep.subr.mxu0 0.0
  %738 = vmatpush1.msra.mxu0 0.0
  %739 = vmatprep.subr.mxu0 0.0
  %740 = vmatpush1.msra.mxu0 0.0
  %741 = vmatprep.subr.mxu0 0.0
  %742 = vmatpush1.msra.mxu0 0.0
  %743 = vmatprep.subr.mxu0 0.0
  %744 = vmatpush1.msra.mxu0 0.0
  %745 = vmatprep.subr.mxu0 0.0
  %746 = vmatpush1.msra.mxu0 0.0
  %747 = vmatprep.subr.mxu0 0.0
  %748 = vmatpush1.msra.mxu0 0.0
  %749 = vmatprep.subr.mxu0 0.0
  %750 = vmatpush1.msra.mxu0 0.0
  %751 = vmatprep.subr.mxu0 0.0
  %752 = vmatpush1.msra.mxu0 0.0
  %753 = vmatprep.subr.mxu0 0.0
  %754 = vmatpush1.msra.mxu0 0.0
  %755 = vmatprep.subr.mxu0 0.0
  %756 = vmatpush1.msra.mxu0 0.0
  %757 = vmatprep.subr.mxu0 0.0
  %758 = vmatpush1.msra.mxu0 0.0
  %759 = vmatprep.subr.mxu0 0.0
  %760 = vmatpush1.msra.mxu0 0.0
  %761 = vmatprep.subr.mxu0 0.0
  %762 = vmatpush1.msra.mxu0 0.0
  %763 = vmatprep.subr.mxu0 0.0
  %764 = vmatpush1.msra.mxu0 0.0
  %765 = vmatprep.subr.mxu0 0.0
  %766 = vmatpush1.msra.mxu0 0.0
  %767 = vmatprep.subr.mxu0 0.0
  %768 = vmatpush1.msra.mxu0 0.0
  %769 = vmatprep.subr.mxu0 0.0
  %770 = vmatpush1.msra.mxu0 0.0
  %771 = vmatprep.subr.mxu0 0.0
  %772 = vmatpush1.msra.mxu0 0.0
  %773 = vmatprep.subr.mxu0 0.0
  %774 = vmatpush1.msra.mxu0 0.0
  %775 = vmatprep.subr.mxu0 0.0
  %776 = vmatpush1.msra.mxu0 0.0
  %777 = vmatprep.subr.mxu0 0.0
  %778 = vmatpush1.msra.mxu0 0.0
  %779 = vmatprep.subr.mxu0 0.0
  %780 = vmatpush1.msra.mxu0 0.0
  %781 = vmatprep.subr.mxu0 0.0
  %782 = vmatpush1.msra.mxu0 0.0
  %783 = vmatprep.subr.mxu0 0.0
  %784 = vmatpush1.msra.mxu0 0.0
  %785 = vmatprep.mubr.f32.mxu0 0.0
  %786 = vmatmul.mubr.f32.gmra.mrb[0].mxu0 %v719
  %v787 = vpop.f32.mrb[0].mxu0
  %v788 = vadd.f32 0.0, %v787
  %v789 = vpop.f32.mrb[0].mxu0
  %v790 = vadd.f32 0.0, %v789
  %791 = vdwg.mxu0
  %v792 = vadd.f32 %v188, %v788
  %v793 = vadd.f32 %v190, %v790
  %v794 = vmul.f32 %v792, %v34
  %v795 = vmul.f32 %v793, %v35
  %v796 = vtanh.pop %v794
  %v797 = vtanh.pop %v795
  %v798 = vmul.f32 %v796, %v34
  %v799 = vmul.f32 %v797, %v35
  %v800 = vadd.f32 %v798, %v36
  %v801 = vadd.f32 %v799, %v37
  %v802 = vmul.f32 %v800, %v713
  %v803 = vmul.f32 %v800, %v801
  %805 = vrot.lane.b32.xlu0 %v803, 64
  %v806 = vpop.permute.xlu0 %805
  %v808 = vadd.f32 %v802, %v806
  %v809 = vtanh.pop %v808
  %v810 = vmul.f32 %v801, %v809
  %812 = vrot.lane.b32.xlu0 %v810, 64
  %v813 = vpop.permute.xlu0 %812
  %v814 = vsel %vm243, %v813, 0
  %816 = vmatprep.subr.mxu0 %v199
  %817 = vmatpush1.msra.mxu0 %v198
  %818 = vmatprep.subr.mxu0 %v201
  %819 = vmatpush1.msra.mxu0 %v200
  %820 = vmatprep.subr.mxu0 %v203
  %821 = vmatpush1.msra.mxu0 %v202
  %822 = vmatprep.subr.mxu0 %v205
  %823 = vmatpush1.msra.mxu0 %v204
  %824 = vmatprep.subr.mxu0 %v207
  %825 = vmatpush1.msra.mxu0 %v206
  %826 = vmatprep.subr.mxu0 %v209
  %827 = vmatpush1.msra.mxu0 %v208
  %828 = vmatprep.subr.mxu0 %v211
  %829 = vmatpush1.msra.mxu0 %v210
  %830 = vmatprep.subr.mxu0 %v213
  %831 = vmatpush1.msra.mxu0 %v212
  %832 = vmatprep.subr.mxu0 0.0
  %833 = vmatpush1.msra.mxu0 0.0
  %834 = vmatprep.subr.mxu0 0.0
  %835 = vmatpush1.msra.mxu0 0.0
  %836 = vmatprep.subr.mxu0 0.0
  %837 = vmatpush1.msra.mxu0 0.0
  %838 = vmatprep.subr.mxu0 0.0
  %839 = vmatpush1.msra.mxu0 0.0
  %840 = vmatprep.subr.mxu0 0.0
  %841 = vmatpush1.msra.mxu0 0.0
  %842 = vmatprep.subr.mxu0 0.0
  %843 = vmatpush1.msra.mxu0 0.0
  %844 = vmatprep.subr.mxu0 0.0
  %845 = vmatpush1.msra.mxu0 0.0
  %846 = vmatprep.subr.mxu0 0.0
  %847 = vmatpush1.msra.mxu0 0.0
  %848 = vmatprep.subr.mxu0 0.0
  %849 = vmatpush1.msra.mxu0 0.0
  %850 = vmatprep.subr.mxu0 0.0
  %851 = vmatpush1.msra.mxu0 0.0
  %852 = vmatprep.subr.mxu0 0.0
  %853 = vmatpush1.msra.mxu0 0.0
  %854 = vmatprep.subr.mxu0 0.0
  %855 = vmatpush1.msra.mxu0 0.0
  %856 = vmatprep.subr.mxu0 0.0
  %857 = vmatpush1.msra.mxu0 0.0
  %858 = vmatprep.subr.mxu0 0.0
  %859 = vmatpush1.msra.mxu0 0.0
  %860 = vmatprep.subr.mxu0 0.0
  %861 = vmatpush1.msra.mxu0 0.0
  %862 = vmatprep.subr.mxu0 0.0
  %863 = vmatpush1.msra.mxu0 0.0
  %864 = vmatprep.subr.mxu0 0.0
  %865 = vmatpush1.msra.mxu0 0.0
  %866 = vmatprep.subr.mxu0 0.0
  %867 = vmatpush1.msra.mxu0 0.0
  %868 = vmatprep.subr.mxu0 0.0
  %869 = vmatpush1.msra.mxu0 0.0
  %870 = vmatprep.subr.mxu0 0.0
  %871 = vmatpush1.msra.mxu0 0.0
  %872 = vmatprep.subr.mxu0 0.0
  %873 = vmatpush1.msra.mxu0 0.0
  %874 = vmatprep.subr.mxu0 0.0
  %875 = vmatpush1.msra.mxu0 0.0
  %876 = vmatprep.subr.mxu0 0.0
  %877 = vmatpush1.msra.mxu0 0.0
  %878 = vmatprep.subr.mxu0 0.0
  %879 = vmatpush1.msra.mxu0 0.0
  %880 = vmatprep.mubr.f32.mxu0 0.0
  %881 = vmatmul.mubr.f32.gmra.mrb[0].mxu0 %v814
  %v882 = vpop.f32.mrb[0].mxu0
  %v883 = vadd.f32 0.0, %v882
  %v884 = vpop.f32.mrb[0].mxu0
  %v885 = vadd.f32 0.0, %v884
  %886 = vdwg.mxu0
  %v887 = vadd.f32 %v194, %v883
  %v888 = vadd.f32 %v196, %v885
  %v889 = vmul.f32 %v887, %v34
  %v890 = vmul.f32 %v888, %v35
  %v891 = vtanh.pop %v889
  %v892 = vtanh.pop %v890
  %v893 = vmul.f32 %v891, %v34
  %v894 = vmul.f32 %v892, %v35
  %v895 = vadd.f32 %v893, %v36
  %v896 = vadd.f32 %v894, %v37
  %v897 = vmul.f32 %v895, %v808
  %v898 = vmul.f32 %v895, %v896
  %900 = vrot.lane.b32.xlu0 %v898, 64
  %v901 = vpop.permute.xlu0 %900
  %v903 = vadd.f32 %v897, %v901
  %v904 = vtanh.pop %v903
  %v905 = vmul.f32 %v896, %v904
  %907 = vrot.lane.b32.xlu0 %v905, 64
  %v908 = vpop.permute.xlu0 %907
  %v909 = vsel %vm243, %v908, 0
  %911 = vmatprep.subr.mxu0 %v199
  %912 = vmatpush1.msra.mxu0 %v198
  %913 = vmatprep.subr.mxu0 %v201
  %914 = vmatpush1.msra.mxu0 %v200
  %915 = vmatprep.subr.mxu0 %v203
  %916 = vmatpush1.msra.mxu0 %v202
  %917 = vmatprep.subr.mxu0 %v205
  %918 = vmatpush1.msra.mxu0 %v204
  %919 = vmatprep.subr.mxu0 %v207
  %920 = vmatpush1.msra.mxu0 %v206
  %921 = vmatprep.subr.mxu0 %v209
  %922 = vmatpush1.msra.mxu0 %v208
  %923 = vmatprep.subr.mxu0 %v211
  %924 = vmatpush1.msra.mxu0 %v210
  %925 = vmatprep.subr.mxu0 %v213
  %926 = vmatpush1.msra.mxu0 %v212
  %927 = vmatprep.subr.mxu0 0.0
  %928 = vmatpush1.msra.mxu0 0.0
  %929 = vmatprep.subr.mxu0 0.0
  %930 = vmatpush1.msra.mxu0 0.0
  %931 = vmatprep.subr.mxu0 0.0
  %932 = vmatpush1.msra.mxu0 0.0
  %933 = vmatprep.subr.mxu0 0.0
  %934 = vmatpush1.msra.mxu0 0.0
  %935 = vmatprep.subr.mxu0 0.0
  %936 = vmatpush1.msra.mxu0 0.0
  %937 = vmatprep.subr.mxu0 0.0
  %938 = vmatpush1.msra.mxu0 0.0
  %939 = vmatprep.subr.mxu0 0.0
  %940 = vmatpush1.msra.mxu0 0.0
  %941 = vmatprep.subr.mxu0 0.0
  %942 = vmatpush1.msra.mxu0 0.0
  %943 = vmatprep.subr.mxu0 0.0
  %944 = vmatpush1.msra.mxu0 0.0
  %945 = vmatprep.subr.mxu0 0.0
  %946 = vmatpush1.msra.mxu0 0.0
  %947 = vmatprep.subr.mxu0 0.0
  %948 = vmatpush1.msra.mxu0 0.0
  %949 = vmatprep.subr.mxu0 0.0
  %950 = vmatpush1.msra.mxu0 0.0
  %951 = vmatprep.subr.mxu0 0.0
  %952 = vmatpush1.msra.mxu0 0.0
  %953 = vmatprep.subr.mxu0 0.0
  %954 = vmatpush1.msra.mxu0 0.0
  %955 = vmatprep.subr.mxu0 0.0
  %956 = vmatpush1.msra.mxu0 0.0
  %957 = vmatprep.subr.mxu0 0.0
  %958 = vmatpush1.msra.mxu0 0.0
  %959 = vmatprep.subr.mxu0 0.0
  %960 = vmatpush1.msra.mxu0 0.0
  %961 = vmatprep.subr.mxu0 0.0
  %962 = vmatpush1.msra.mxu0 0.0
  %963 = vmatprep.subr.mxu0 0.0
  %964 = vmatpush1.msra.mxu0 0.0
  %965 = vmatprep.subr.mxu0 0.0
  %966 = vmatpush1.msra.mxu0 0.0
  %967 = vmatprep.subr.mxu0 0.0
  %968 = vmatpush1.msra.mxu0 0.0
  %969 = vmatprep.subr.mxu0 0.0
  %970 = vmatpush1.msra.mxu0 0.0
  %971 = vmatprep.subr.mxu0 0.0
  %972 = vmatpush1.msra.mxu0 0.0
  %973 = vmatprep.subr.mxu0 0.0
  %974 = vmatpush1.msra.mxu0 0.0
  %975 = vmatprep.mubr.f32.mxu0 0.0
  %976 = vmatmul.mubr.f32.gmra.mrb[0].mxu0 %v909
  %v977 = vpop.f32.mrb[0].mxu0
  %v978 = vadd.f32 0.0, %v977
  %v979 = vpop.f32.mrb[0].mxu0
  %v980 = vadd.f32 0.0, %v979
  %981 = vdwg.mxu0
  %v982 = vadd.f32 %v194, %v978
  %v983 = vadd.f32 %v196, %v980
  %v984 = vmul.f32 %v982, %v34
  %v985 = vmul.f32 %v983, %v35
  %v986 = vtanh.pop %v984
  %v987 = vtanh.pop %v985
  %v988 = vmul.f32 %v986, %v34
  %v989 = vmul.f32 %v987, %v35
  %v990 = vadd.f32 %v988, %v36
  %v991 = vadd.f32 %v989, %v37
  %v992 = vmul.f32 %v990, %v903
  %v993 = vmul.f32 %v990, %v991
  %995 = vrot.lane.b32.xlu0 %v993, 64
  %v996 = vpop.permute.xlu0 %995
  %v998 = vadd.f32 %v992, %v996
  %v999 = vtanh.pop %v998
  %v1000 = vmul.f32 %v991, %v999
  %v1001 = vld [vmem:[%s4] sm:$0xff]
  %v1002 = vld [vmem:[%s4 + $0x8] sm:$0xff]
  %v1003 = vld [vmem:[%s4 + $0x10] sm:$0xff]
  %v1004 = vld [vmem:[%s4 + $0x18] sm:$0xff]
  %v1005 = vld [vmem:[#allocation2] sm:$0x1]
  %v1007 = vlaneseq
  %v1008 = vshrl.u32 %v1007, 7
  %v1009 = vsub.s32 0, %v1008
  %v1010 = vrot.slane %v1005, %v1009
  %1013 = vrot.lane.b32.xlu0 %v1000, 32
  %v1014 = vpop.permute.xlu0 %1013
  %vm1015 = vcmask 261120
  %v1016 = vsel %vm1015, %v1014, 0
  %1018 = vmatprep.subr.mxu0 0.0
  %1019 = vmatpush1.msra.mxu0 %v1001
  %1020 = vmatprep.subr.mxu0 0.0
  %1021 = vmatpush1.msra.mxu0 %v1002
  %1022 = vmatprep.subr.mxu0 0.0
  %1023 = vmatpush1.msra.mxu0 %v1003
  %1024 = vmatprep.subr.mxu0 0.0
  %1025 = vmatpush1.msra.mxu0 %v1004
  %1026 = vmatprep.subr.mxu0 0.0
  %1027 = vmatpush1.msra.mxu0 0.0
  %1028 = vmatprep.subr.mxu0 0.0
  %1029 = vmatpush1.msra.mxu0 0.0
  %1030 = vmatprep.subr.mxu0 0.0
  %1031 = vmatpush1.msra.mxu0 0.0
  %1032 = vmatprep.subr.mxu0 0.0
  %1033 = vmatpush1.msra.mxu0 0.0
  %1034 = vmatprep.subr.mxu0 0.0
  %1035 = vmatpush1.msra.mxu0 0.0
  %1036 = vmatprep.subr.mxu0 0.0
  %1037 = vmatpush1.msra.mxu0 0.0
  %1038 = vmatprep.subr.mxu0 0.0
  %1039 = vmatpush1.msra.mxu0 0.0
  %1040 = vmatprep.subr.mxu0 0.0
  %1041 = vmatpush1.msra.mxu0 0.0
  %1042 = vmatprep.subr.mxu0 0.0
  %1043 = vmatpush1.msra.mxu0 0.0
  %1044 = vmatprep.subr.mxu0 0.0
  %1045 = vmatpush1.msra.mxu0 0.0
  %1046 = vmatprep.subr.mxu0 0.0
  %1047 = vmatpush1.msra.mxu0 0.0
  %1048 = vmatprep.subr.mxu0 0.0
  %1049 = vmatpush1.msra.mxu0 0.0
  %1050 = vmatprep.subr.mxu0 0.0
  %1051 = vmatpush1.msra.mxu0 0.0
  %1052 = vmatprep.subr.mxu0 0.0
  %1053 = vmatpush1.msra.mxu0 0.0
  %1054 = vmatprep.subr.mxu0 0.0
  %1055 = vmatpush1.msra.mxu0 0.0
  %1056 = vmatprep.subr.mxu0 0.0
  %1057 = vmatpush1.msra.mxu0 0.0
  %1058 = vmatprep.subr.mxu0 0.0
  %1059 = vmatpush1.msra.mxu0 0.0
  %1060 = vmatprep.subr.mxu0 0.0
  %1061 = vmatpush1.msra.mxu0 0.0
  %1062 = vmatprep.subr.mxu0 0.0
  %1063 = vmatpush1.msra.mxu0 0.0
  %1064 = vmatprep.subr.mxu0 0.0
  %1065 = vmatpush1.msra.mxu0 0.0
  %1066 = vmatprep.subr.mxu0 0.0
  %1067 = vmatpush1.msra.mxu0 0.0
  %1068 = vmatprep.subr.mxu0 0.0
  %1069 = vmatpush1.msra.mxu0 0.0
  %1070 = vmatprep.subr.mxu0 0.0
  %1071 = vmatpush1.msra.mxu0 0.0
  %1072 = vmatprep.subr.mxu0 0.0
  %1073 = vmatpush1.msra.mxu0 0.0
  %1074 = vmatprep.subr.mxu0 0.0
  %1075 = vmatpush1.msra.mxu0 0.0
  %1076 = vmatprep.subr.mxu0 0.0
  %1077 = vmatpush1.msra.mxu0 0.0
  %1078 = vmatprep.subr.mxu0 0.0
  %1079 = vmatpush1.msra.mxu0 0.0
  %1080 = vmatprep.subr.mxu0 0.0
  %1081 = vmatpush1.msra.mxu0 0.0
  %1082 = vmatprep.mubr.f32.mxu0 0.0
  %1083 = vmatmul.mubr.f32.gmra.mrb[0].mxu0 %v1016
  %v1084 = vpop.f32.mrb[0].mxu0
  %v1085 = vadd.f32 %v1010, %v1084
  %v1086 = vpop.f32.mrb[0].mxu0
  %1087 = vdwg.mxu0
  %vm1088 = vcmask 7168
  %1089 = vst.msk [vmem:[%s6] sm:$0xff] %vm1088, %v1085
  // Predicated region
  $region26: #{lstm_model_forward.1} parent=0 // pred_check
    _
  $region27: #{lstm_model_forward.1} parent=0 // pred_check_branch
    %1091 = sbr.rel (0) target = $region29
  $region28: #{lstm_model_forward.1} parent=0 // pred_region
    _
  $region29: #{lstm_model_forward.1} parent=0 // pred_fallthru
    _
  // Predicated region
  $region30: #{lstm_model_forward.1} parent=0 // pred_check
    _
  $region31: #{lstm_model_forward.1} parent=0 // pred_check_branch
    %1093 = sbr.rel (0) target = $region33
  $region32: #{lstm_model_forward.1} parent=0 // pred_region
    _
  $region33: #{lstm_model_forward.1} parent=0 // pred_fallthru
    _

</llo_original>
